<compile_context>
chip_gen: v7x
topology: tpu7x:2x2x1
jax: 0.10.0
libtpu: 0.0.40
codegen_flags: <defaults>
</compile_context>

<pallas_src>
import functools

import jax
import jax.numpy as jnp
import numpy as np
from jax.experimental import pallas as pl
from jax.experimental.pallas import tpu as pltpu

_LANE = 128


def _round_up(a, b):
    return (a + b - 1) // b * b


def _tblock_kernel(*refs, K, dilation, pad, use_downsample, has_halo,
                   non_linear, gelu_approximate, compute_dtype,
                   fuse_conv1, fuse_conv2):
    """One (batch, time-tile) grid point.

    Refs (in order): x_tile, [halo], w1f, b1, w2f, b2, [wds, bds], out.
      x_tile : (1, c_in, TL)            input dtype (f32)
      halo   : (1, 1, c_in, 2*pad)      input dtype  (x columns left of tile)
      w1f    : (c_out, K*c_in)          compute_dtype (tap-fused conv1 weight)
      w2f    : (c_out, K*c_out)         compute_dtype (tap-fused conv2 weight)
      b*     : (c_out, 1)               float32
      out    : (1, c_out, TL)           out dtype
    """
    it = iter(refs)
    x_ref = next(it)
    halo_ref = next(it) if has_halo else None
    w1_ref = next(it)
    b1_ref = next(it)
    w2_ref = next(it)
    b2_ref = next(it)
    if use_downsample:
        wds_ref = next(it)
        bds_ref = next(it)
    o_ref = next(it)

    if non_linear == "relu":
        act = lambda v: jnp.maximum(v, 0.0)
    else:
        # default approximate=False -> exact erf GELU (matches torch.nn.GELU)
        act = lambda v: jax.nn.gelu(v, approximate=gelu_approximate)

    c_in = x_ref.shape[1]
    tl = x_ref.shape[2]
    c_out = w1_ref.shape[0]
    d = dilation
    w1h = tl + pad          # h1 covers global columns [t0 - pad, t0 + TL)

    x_f32 = x_ref[0]                                   # (c_in, TL), input dtype
    x_tile = x_f32.astype(compute_dtype)
    if has_halo:
        # x_win[:, m] == x[:, T0 - 2*pad + m]  (zeros where index < 0)
        x_win = jnp.concatenate(
            [halo_ref[0, 0].astype(compute_dtype), x_tile], axis=-1)
    else:
        x_win = x_tile

    def dilated_conv(w_full, src, n_src, width, fuse):
        """w_full: (c_out, K*n_src), src: (n_src, >=pad+width) -> (c_out, width) f32."""
        if fuse:
            xs = [src[:, k * d:k * d + width] for k in range(K)]
            stack = xs[0] if K == 1 else jnp.concatenate(xs, axis=0)
            return jnp.dot(w_full, stack, preferred_element_type=jnp.float32)
        acc = None
        for k in range(K):
            part = jnp.dot(w_full[:, k * n_src:(k + 1) * n_src],
                           src[:, k * d:k * d + width],
                           preferred_element_type=jnp.float32)
            acc = part if acc is None else acc + part
        return acc

    # ---- conv1 (dilated, causal) --------------------------------------------
    h1 = dilated_conv(w1_ref[...], x_win, c_in, w1h, fuse_conv1)
    h1 = act(h1 + b1_ref[...])
    # dropout1: identity (p=0 / eval)
    if pad > 0:
        # Columns with global h1 index < 0 are conv2's left zero-padding.
        t0 = pl.program_id(1) * tl
        col = jax.lax.broadcasted_iota(jnp.int32, (1, w1h), 1)
        h1 = jnp.where(col + t0 >= pad, h1, 0.0)
    h1c = h1.astype(compute_dtype)

    # ---- conv2 (dilated, causal) --------------------------------------------
    h2 = dilated_conv(w2_ref[...], h1c, c_out, tl, fuse_conv2)
    h2 = act(h2 + b2_ref[...])
    # dropout2: identity (p=0 / eval)

    # ---- residual + final ReLU ----------------------------------------------
    if use_downsample:
        res = jnp.dot(wds_ref[...], x_tile,
                      preferred_element_type=jnp.float32) + bds_ref[...]
    else:
        res = x_f32.astype(jnp.float32)   # full input precision, matches PyTorch
    o_ref[0] = jnp.maximum(h2 + res, 0.0).astype(o_ref.dtype)


def _weight_norm(v, g):
    # PyTorch weight_norm for Conv1d (dim=0): w = g * v / ||v||_(in,ks)
    norm = jnp.sqrt(jnp.sum(v * v, axis=(1, 2), keepdims=True))
    return g * v / norm


def temporal_block(x, params, *, kernel_size, dilation, padding,
                   non_linear="relu", gelu_approximate=False,
                   compute_dtype=jnp.bfloat16, out_dtype=None,
                   time_tile=None, tap_split_channels=256,
                   vmem_budget_bytes=36 * 2**20):
    """TemporalBlock forward. x: (N, C_in, L) -> (N, C_out, L) [out_dtype]."""
    N, c_in, L = x.shape
    K = kernel_size
    pad = padding
    # The PyTorch block only type-checks when chomp makes the conv causal.
    assert pad == (K - 1) * dilation, "TemporalBlock requires padding=(K-1)*dilation"

    w1 = _weight_norm(params["v1"], params["g1"])       # (C_out, C_in, K)
    w2 = _weight_norm(params["v2"], params["g2"])       # (C_out, C_out, K)
    c_out = w1.shape[0]
    use_ds = "w_ds" in params
    out_dtype = x.dtype if out_dtype is None else out_dtype

    # Tap-fused weights: column layout [k*c + i] matches the stacked RHS.
    w1f = jnp.transpose(w1, (0, 2, 1)).reshape(c_out, K * c_in).astype(compute_dtype)
    w2f = jnp.transpose(w2, (0, 2, 1)).reshape(c_out, K * c_out).astype(compute_dtype)
    b1 = params["b1"].reshape(c_out, 1).astype(jnp.float32)
    b2 = params["b2"].reshape(c_out, 1).astype(jnp.float32)

    # im2col fusion only pays below the MXU contraction width.
    fuse1 = c_in < tap_split_channels
    fuse2 = c_out < tap_split_channels

    in_b = jnp.dtype(x.dtype).itemsize
    cp_b = jnp.dtype(compute_dtype).itemsize
    ot_b = jnp.dtype(out_dtype).itemsize
    hw = 2 * pad

    def footprint(tl):
        w1h = tl + pad
        blocks = 2 * c_in * tl * in_b + 2 * c_out * tl * ot_b     # double-buffered
        if pad > 0:
            blocks += 2 * c_in * hw * in_b
        weights = 2 * (c_out * K * c_in + c_out * K * c_out) * cp_b + 6 * c_out * 4
        if use_ds:
            weights += 2 * c_out * c_in * cp_b
        temps = (c_in * (tl + hw) * cp_b                           # x_win
                 + (K * c_in * w1h * cp_b if fuse1 else 0)         # x_stack
                 + c_out * w1h * (4 + cp_b)                        # h1 f32 + cast
                 + (K * c_out * tl * cp_b if fuse2 else 0)         # h_stack
                 + 2 * c_out * tl * 4)                             # h2 + res f32
        return blocks + weights + temps

    # Time tiling: lane-dense 128-multiple tiles, VMEM-aware.
    TL = _round_up(time_tile, _LANE) if time_tile is not None else 2048
    TL = min(TL, _round_up(L, _LANE))
    if N == 1 and L > _LANE:
        # Keep at least 2 time tiles so both v7x TensorCores get work.
        TL = min(TL, max(_LANE, _round_up(-(-L // 2), _LANE)))
    while TL > _LANE and footprint(TL) > vmem_budget_bytes:
        TL -= _LANE
    num_t = -(-L // TL)

    args = [x]
    in_specs = [pl.BlockSpec((1, c_in, TL), lambda n, t: (n, 0, t))]
    if pad > 0:
        # Halo for tile t: x[:, :, t*TL - 2*pad : t*TL] (zeros where index < 0).
        # Built with a tiny gather -- no full-x pad / copy in HBM.
        idx = np.arange(num_t)[:, None] * TL - hw + np.arange(hw)[None, :]
        valid = jnp.asarray((idx >= 0).reshape(-1))
        idx_c = jnp.asarray(np.clip(idx, 0, L - 1).reshape(-1))
        halos = jnp.take(x, idx_c, axis=2)                        # (N, c_in, num_t*hw)
        halos = jnp.where(valid[None, None, :], halos, jnp.zeros((), x.dtype))
        halos = jnp.transpose(halos.reshape(N, c_in, num_t, hw), (0, 2, 1, 3))
        args.append(halos)
        in_specs.append(
            pl.BlockSpec((1, 1, c_in, hw), lambda n, t: (n, t, 0, 0)))
    args += [w1f, b1, w2f, b2]
    in_specs += [
        pl.BlockSpec((c_out, K * c_in), lambda n, t: (0, 0)),
        pl.BlockSpec((c_out, 1), lambda n, t: (0, 0)),
        pl.BlockSpec((c_out, K * c_out), lambda n, t: (0, 0)),
        pl.BlockSpec((c_out, 1), lambda n, t: (0, 0)),
    ]
    if use_ds:
        args += [params["w_ds"].astype(compute_dtype),
                 params["b_ds"].reshape(c_out, 1).astype(jnp.float32)]
        in_specs += [pl.BlockSpec((c_out, c_in), lambda n, t: (0, 0)),
                     pl.BlockSpec((c_out, 1), lambda n, t: (0, 0))]

    kernel = functools.partial(
        _tblock_kernel, K=K, dilation=dilation, pad=pad,
        use_downsample=use_ds, has_halo=pad > 0, non_linear=non_linear,
        gelu_approximate=gelu_approximate, compute_dtype=compute_dtype,
        fuse_conv1=fuse1, fuse_conv2=fuse2)

    compiler_kwargs = {}
    vmem_need = int(1.5 * footprint(TL))
    if vmem_need > 16 * 2**20:   # only raise the scoped-VMEM limit when needed
        compiler_kwargs["vmem_limit_bytes"] = int(
            min(48 * 2**20, max(vmem_need, 32 * 2**20)))

    # Output emitted at true length L: Pallas masks the partial last tile's
    # stores, so no trailing slice (and no extra full HBM pass) is needed.
    out = pl.pallas_call(
        kernel,
        out_shape=jax.ShapeDtypeStruct((N, c_out, L), out_dtype),
        grid_spec=pltpu.PrefetchScalarGridSpec(
            num_scalar_prefetch=0,
            grid=(N, num_t),
            in_specs=in_specs,
            out_specs=pl.BlockSpec((1, c_out, TL), lambda n, t: (n, 0, t)),
        ),
        compiler_params=pltpu.CompilerParams(
            dimension_semantics=("parallel", "parallel"), **compiler_kwargs),
    )(*args)
    return out


# ----------------------------- reference (pure JAX) -------------------------
def _conv1d_ref(x, w, b, dilation, padding):
    out = jax.lax.conv_general_dilated(
        x, w, window_strides=(1,), padding=[(padding, padding)],
        rhs_dilation=(dilation,), dimension_numbers=("NCH", "OIH", "NCH"))
    return out + b[None, :, None]


def temporal_block_ref(x, params, *, kernel_size, dilation, padding,
                       non_linear="relu", gelu_approximate=False):
    act = ((lambda v: jnp.maximum(v, 0.0)) if non_linear == "relu"
           else (lambda v: jax.nn.gelu(v, approximate=gelu_approximate)))
    w1 = _weight_norm(params["v1"], params["g1"])
    w2 = _weight_norm(params["v2"], params["g2"])

    def chomp(y):
        return y[:, :, :-padding] if padding > 0 else y

    h1 = act(chomp(_conv1d_ref(x, w1, params["b1"], dilation, padding)))
    h2 = act(chomp(_conv1d_ref(h1, w2, params["b2"], dilation, padding)))
    if "w_ds" in params:
        res = _conv1d_ref(x, params["w_ds"][:, :, None], params["b_ds"], 1, 0)
    else:
        res = x
    return jnp.maximum(h2 + res, 0.0)


# ----------------------------- parameter init -------------------------------
def init_params(key, n_inputs, n_outputs, kernel_size):
    keys = jax.random.split(key, 6)
    v1 = jax.random.normal(keys[0], (n_outputs, n_inputs, kernel_size),
                           jnp.float32) * 0.3
    g1 = jnp.sqrt(jnp.sum(v1 * v1, axis=(1, 2), keepdims=True))  # PyTorch init: g = ||v||
    b1 = jax.random.normal(keys[1], (n_outputs,), jnp.float32) * 0.1
    v2 = jax.random.normal(keys[2], (n_outputs, n_outputs, kernel_size),
                           jnp.float32) * 0.3
    g2 = jnp.sqrt(jnp.sum(v2 * v2, axis=(1, 2), keepdims=True))
    b2 = jax.random.normal(keys[3], (n_outputs,), jnp.float32) * 0.1
    params = dict(v1=v1, g1=g1, b1=b1, v2=v2, g2=g2, b2=b2)
    if n_inputs != n_outputs:
        params["w_ds"] = jax.random.normal(keys[4], (n_outputs, n_inputs),
                                           jnp.float32) * 0.3
        params["b_ds"] = jax.random.normal(keys[5], (n_outputs,),
                                           jnp.float32) * 0.1
    return params


if __name__ == "__main__":
    key = jax.random.PRNGKey(0)
    kx, kp, kx2, kp2 = jax.random.split(key, 4)

    K, DIL = 3, 2
    PAD = (K - 1) * DIL          # standard TCN causal padding

    # ---- Test 1: downsample residual path (c_in != c_out), single tile ----
    N, C_IN, C_OUT, L = 2, 4, 8, 16
    x = jax.random.normal(kx, (N, C_IN, L), jnp.float32)
    params = init_params(kp, C_IN, C_OUT, K)
    ref = temporal_block_ref(x, params, kernel_size=K, dilation=DIL, padding=PAD)

    out_f32 = jax.block_until_ready(temporal_block(
        x, params, kernel_size=K, dilation=DIL, padding=PAD,
        compute_dtype=jnp.float32))
    np.testing.assert_allclose(np.asarray(out_f32), np.asarray(ref),
                               rtol=5e-4, atol=5e-4)

    out_bf16 = jax.block_until_ready(temporal_block(
        x, params, kernel_size=K, dilation=DIL, padding=PAD,
        compute_dtype=jnp.bfloat16))
    np.testing.assert_allclose(np.asarray(out_bf16), np.asarray(ref),
                               rtol=5e-2, atol=5e-2)

    # bf16 output stream (halved HBM write traffic), loose tolerance
    out_bf16o = jax.block_until_ready(temporal_block(
        x, params, kernel_size=K, dilation=DIL, padding=PAD,
        compute_dtype=jnp.bfloat16, out_dtype=jnp.bfloat16))
    np.testing.assert_allclose(np.asarray(out_bf16o).astype(np.float32),
                               np.asarray(ref), rtol=5e-2, atol=5e-2)

    # GELU (tanh approximation -> EUP) path
    ref_g = temporal_block_ref(x, params, kernel_size=K, dilation=DIL,
                               padding=PAD, non_linear="gelu",
                               gelu_approximate=True)
    out_g = jax.block_until_ready(temporal_block(
        x, params, kernel_size=K, dilation=DIL, padding=PAD,
        non_linear="gelu", gelu_approximate=True, compute_dtype=jnp.float32))
    np.testing.assert_allclose(np.asarray(out_g), np.asarray(ref_g),
                               rtol=5e-4, atol=5e-4)

    # ---- Test 2: identity residual, multiple time tiles + partial last tile
    N2, C2, L2 = 2, 8, 300
    x2 = jax.random.normal(kx2, (N2, C2, L2), jnp.float32)
    params2 = init_params(kp2, C2, C2, K)
    ref2 = temporal_block_ref(x2, params2, kernel_size=K, dilation=DIL,
                              padding=PAD)
    out2 = jax.block_until_ready(temporal_block(
        x2, params2, kernel_size=K, dilation=DIL, padding=PAD,
        compute_dtype=jnp.float32, time_tile=128))
    np.testing.assert_allclose(np.asarray(out2), np.asarray(ref2),
                               rtol=5e-4, atol=5e-4)

    # ---- Test 3: force the per-tap (non-im2col) large-channel code path ----
    out3 = jax.block_until_ready(temporal_block(
        x2, params2, kernel_size=K, dilation=DIL, padding=PAD,
        compute_dtype=jnp.float32, time_tile=128, tap_split_channels=1))
    np.testing.assert_allclose(np.asarray(out3), np.asarray(ref2),
                               rtol=5e-4, atol=5e-4)

    print("KERNEL_OK")
</pallas_src>

<mosaic_0001>
module attributes {stable_mosaic.version = 11 : i64} {
  func.func @_tblock_kernel(%arg0: i32, %arg1: i32, %arg2: memref<1x4x128xf32, #tpu.memory_space<vmem>>, %arg3: memref<1x1x4x8xf32, #tpu.memory_space<vmem>>, %arg4: memref<8x12xf32, #tpu.memory_space<vmem>>, %arg5: memref<8x1xf32, #tpu.memory_space<vmem>>, %arg6: memref<8x24xf32, #tpu.memory_space<vmem>>, %arg7: memref<8x1xf32, #tpu.memory_space<vmem>>, %arg8: memref<8x4xf32, #tpu.memory_space<vmem>>, %arg9: memref<8x1xf32, #tpu.memory_space<vmem>>, %arg10: memref<1x8x128xf32, #tpu.memory_space<vmem>>) attributes {dimension_semantics = [#tpu.dimension_semantics<parallel>, #tpu.dimension_semantics<parallel>], iteration_bounds = array<i64: 2, 1>, scalar_prefetch = 0 : i64, scratch_operands = 0 : i64, tpu.core_type = #tpu.core_type<tc>, window_params = [{transform_indices = @transform_0, window_bounds = array<i64: 1, 4, 128>}, {transform_indices = @transform_1, window_bounds = array<i64: 1, 1, 4, 8>}, {pipeline_mode = #tpu.pipeline_mode<synchronous>, transform_indices = @transform_2, window_bounds = array<i64: 8, 12>}, {pipeline_mode = #tpu.pipeline_mode<synchronous>, transform_indices = @transform_3, window_bounds = array<i64: 8, 1>}, {pipeline_mode = #tpu.pipeline_mode<synchronous>, transform_indices = @transform_4, window_bounds = array<i64: 8, 24>}, {pipeline_mode = #tpu.pipeline_mode<synchronous>, transform_indices = @transform_5, window_bounds = array<i64: 8, 1>}, {pipeline_mode = #tpu.pipeline_mode<synchronous>, transform_indices = @transform_6, window_bounds = array<i64: 8, 4>}, {pipeline_mode = #tpu.pipeline_mode<synchronous>, transform_indices = @transform_7, window_bounds = array<i64: 8, 1>}, {transform_indices = @transform_8, window_bounds = array<i64: 1, 8, 128>}]} {
    %c0 = arith.constant 0 : index
    %c0_0 = arith.constant 0 : index
    %c0_1 = arith.constant 0 : index
    %0 = vector.load %arg2[%c0, %c0_0, %c0_1] : memref<1x4x128xf32, #tpu.memory_space<vmem>>, vector<1x4x128xf32>
    %1 = vector.shape_cast %0 : vector<1x4x128xf32> to vector<4x128xf32>
    %c0_2 = arith.constant 0 : index
    %c0_3 = arith.constant 0 : index
    %c0_4 = arith.constant 0 : index
    %c0_5 = arith.constant 0 : index
    %2 = vector.load %arg3[%c0_2, %c0_3, %c0_4, %c0_5] : memref<1x1x4x8xf32, #tpu.memory_space<vmem>>, vector<1x1x4x8xf32>
    %3 = vector.shape_cast %2 : vector<1x1x4x8xf32> to vector<4x8xf32>
    %4 = tpu.concatenate %3, %1 in 1 : vector<4x8xf32>, vector<4x128xf32> -> vector<4x136xf32>
    %c0_6 = arith.constant 0 : index
    %c0_7 = arith.constant 0 : index
    %5 = vector.load %arg4[%c0_6, %c0_7] : memref<8x12xf32, #tpu.memory_space<vmem>>, vector<8x12xf32>
    %6 = vector.extract_strided_slice %4 {offsets = [0, 0], sizes = [4, 132], strides = [1, 1]} : vector<4x136xf32> to vector<4x132xf32>
    %7 = vector.extract_strided_slice %4 {offsets = [0, 2], sizes = [4, 132], strides = [1, 1]} : vector<4x136xf32> to vector<4x132xf32>
    %8 = vector.extract_strided_slice %4 {offsets = [0, 4], sizes = [4, 132], strides = [1, 1]} : vector<4x136xf32> to vector<4x132xf32>
    %9 = tpu.concatenate %6, %7, %8 in 0 : vector<4x132xf32>, vector<4x132xf32>, vector<4x132xf32> -> vector<12x132xf32>
    %cst = arith.constant dense<0.000000e+00> : vector<8x132xf32>
    %10 = tpu.matmul %5, %9, %cst {dimension_numbers = #tpu.dot_dimension_numbers<[1], [0], [0], [1], [0, 0, 1, 1], [], []>} : vector<8x12xf32>, vector<12x132xf32>, vector<8x132xf32> -> vector<8x132xf32>
    %c0_8 = arith.constant 0 : index
    %c0_9 = arith.constant 0 : index
    %11 = vector.load %arg5[%c0_8, %c0_9] : memref<8x1xf32, #tpu.memory_space<vmem>>, vector<8x1xf32>
    %12 = vector.broadcast %11 : vector<8x1xf32> to vector<8x132xf32>
    %13 = arith.addf %10, %12 : vector<8x132xf32>
    %cst_10 = arith.constant 0.000000e+00 : f32
    %14 = vector.broadcast %cst_10 : f32 to vector<8x132xf32>
    %15 = arith.maximumf %13, %14 : vector<8x132xf32>
    %c128_i32 = arith.constant 128 : i32
    %16 = arith.muli %arg1, %c128_i32 : i32
    %17 = tpu.iota {dimensions = array<i32: 1>} : vector<1x132xi32>
    %18 = vector.broadcast %16 : i32 to vector<1x132xi32>
    %19 = arith.addi %17, %18 : vector<1x132xi32>
    %c4_i32 = arith.constant 4 : i32
    %20 = vector.broadcast %c4_i32 : i32 to vector<1x132xi32>
    %21 = arith.cmpi sge, %19, %20 : vector<1x132xi32>
    %cst_11 = arith.constant 0.000000e+00 : f32
    %22 = vector.shape_cast %21 : vector<1x132xi1> to vector<1x132xi1>
    %23 = vector.broadcast %22 : vector<1x132xi1> to vector<8x132xi1>
    %24 = vector.broadcast %cst_11 : f32 to vector<8x132xf32>
    %25 = arith.select %23, %15, %24 : vector<8x132xi1>, vector<8x132xf32>
    %c0_12 = arith.constant 0 : index
    %c0_13 = arith.constant 0 : index
    %26 = vector.load %arg6[%c0_12, %c0_13] : memref<8x24xf32, #tpu.memory_space<vmem>>, vector<8x24xf32>
    %27 = vector.extract_strided_slice %25 {offsets = [0, 0], sizes = [8, 128], strides = [1, 1]} : vector<8x132xf32> to vector<8x128xf32>
    %28 = vector.extract_strided_slice %25 {offsets = [0, 2], sizes = [8, 128], strides = [1, 1]} : vector<8x132xf32> to vector<8x128xf32>
    %29 = vector.extract_strided_slice %25 {offsets = [0, 4], sizes = [8, 128], strides = [1, 1]} : vector<8x132xf32> to vector<8x128xf32>
    %30 = tpu.concatenate %27, %28, %29 in 0 : vector<8x128xf32>, vector<8x128xf32>, vector<8x128xf32> -> vector<24x128xf32>
    %cst_14 = arith.constant dense<0.000000e+00> : vector<8x128xf32>
    %31 = tpu.matmul %26, %30, %cst_14 {dimension_numbers = #tpu.dot_dimension_numbers<[1], [0], [0], [1], [0, 0, 1, 1], [], []>} : vector<8x24xf32>, vector<24x128xf32>, vector<8x128xf32> -> vector<8x128xf32>
    %c0_15 = arith.constant 0 : index
    %c0_16 = arith.constant 0 : index
    %32 = vector.load %arg7[%c0_15, %c0_16] : memref<8x1xf32, #tpu.memory_space<vmem>>, vector<8x1xf32>
    %33 = vector.broadcast %32 : vector<8x1xf32> to vector<8x128xf32>
    %34 = arith.addf %31, %33 : vector<8x128xf32>
    %cst_17 = arith.constant 0.000000e+00 : f32
    %35 = vector.broadcast %cst_17 : f32 to vector<8x128xf32>
    %36 = arith.maximumf %34, %35 : vector<8x128xf32>
    %c0_18 = arith.constant 0 : index
    %c0_19 = arith.constant 0 : index
    %37 = vector.load %arg8[%c0_18, %c0_19] : memref<8x4xf32, #tpu.memory_space<vmem>>, vector<8x4xf32>
    %cst_20 = arith.constant dense<0.000000e+00> : vector<8x128xf32>
    %38 = tpu.matmul %37, %1, %cst_20 {dimension_numbers = #tpu.dot_dimension_numbers<[1], [0], [0], [1], [0, 0, 1, 1], [], []>} : vector<8x4xf32>, vector<4x128xf32>, vector<8x128xf32> -> vector<8x128xf32>
    %c0_21 = arith.constant 0 : index
    %c0_22 = arith.constant 0 : index
    %39 = vector.load %arg9[%c0_21, %c0_22] : memref<8x1xf32, #tpu.memory_space<vmem>>, vector<8x1xf32>
    %40 = vector.broadcast %39 : vector<8x1xf32> to vector<8x128xf32>
    %41 = arith.addf %38, %40 : vector<8x128xf32>
    %42 = arith.addf %36, %41 : vector<8x128xf32>
    %cst_23 = arith.constant 0.000000e+00 : f32
    %43 = vector.broadcast %cst_23 : f32 to vector<8x128xf32>
    %44 = arith.maximumf %42, %43 : vector<8x128xf32>
    %c0_24 = arith.constant 0 : index
    %c0_25 = arith.constant 0 : index
    %c0_26 = arith.constant 0 : index
    %45 = vector.load %arg10[%c0_24, %c0_25, %c0_26] : memref<1x8x128xf32, #tpu.memory_space<vmem>>, vector<1x8x128xf32>
    %46 = vector.shape_cast %45 : vector<1x8x128xf32> to vector<8x128xf32>
    %47 = vector.shape_cast %44 : vector<8x128xf32> to vector<1x8x128xf32>
    tpu.vector_store %arg10[%c0_24, %c0_25, %c0_26], %47 {strides = array<i32>} : memref<1x8x128xf32, #tpu.memory_space<vmem>>, vector<1x8x128xf32>,
    return
  }
  func.func @transform_0(%arg0: i32, %arg1: i32) -> (i32, i32, i32) {
    %c0_i32 = arith.constant 0 : i32
    %c0_i32_0 = arith.constant 0 : i32
    return %arg0, %c0_i32, %arg1 : i32, i32, i32
  }
  func.func @transform_1(%arg0: i32, %arg1: i32) -> (i32, i32, i32, i32) {
    %c0_i32 = arith.constant 0 : i32
    %c0_i32_0 = arith.constant 0 : i32
    %c0_i32_1 = arith.constant 0 : i32
    return %arg0, %arg1, %c0_i32, %c0_i32_0 : i32, i32, i32, i32
  }
  func.func @transform_2(%arg0: i32, %arg1: i32) -> (i32, i32) {
    %c0_i32 = arith.constant 0 : i32
    %c0_i32_0 = arith.constant 0 : i32
    %c0_i32_1 = arith.constant 0 : i32
    return %c0_i32, %c0_i32_0 : i32, i32
  }
  func.func @transform_3(%arg0: i32, %arg1: i32) -> (i32, i32) {
    %c0_i32 = arith.constant 0 : i32
    %c0_i32_0 = arith.constant 0 : i32
    %c0_i32_1 = arith.constant 0 : i32
    return %c0_i32, %c0_i32_0 : i32, i32
  }
  func.func @transform_4(%arg0: i32, %arg1: i32) -> (i32, i32) {
    %c0_i32 = arith.constant 0 : i32
    %c0_i32_0 = arith.constant 0 : i32
    %c0_i32_1 = arith.constant 0 : i32
    return %c0_i32, %c0_i32_0 : i32, i32
  }
  func.func @transform_5(%arg0: i32, %arg1: i32) -> (i32, i32) {
    %c0_i32 = arith.constant 0 : i32
    %c0_i32_0 = arith.constant 0 : i32
    %c0_i32_1 = arith.constant 0 : i32
    return %c0_i32, %c0_i32_0 : i32, i32
  }
  func.func @transform_6(%arg0: i32, %arg1: i32) -> (i32, i32) {
    %c0_i32 = arith.constant 0 : i32
    %c0_i32_0 = arith.constant 0 : i32
    %c0_i32_1 = arith.constant 0 : i32
    return %c0_i32, %c0_i32_0 : i32, i32
  }
  func.func @transform_7(%arg0: i32, %arg1: i32) -> (i32, i32) {
    %c0_i32 = arith.constant 0 : i32
    %c0_i32_0 = arith.constant 0 : i32
    %c0_i32_1 = arith.constant 0 : i32
    return %c0_i32, %c0_i32_0 : i32, i32
  }
  func.func @transform_8(%arg0: i32, %arg1: i32) -> (i32, i32, i32) {
    %c0_i32 = arith.constant 0 : i32
    %c0_i32_0 = arith.constant 0 : i32
    return %arg0, %c0_i32, %arg1 : i32, i32, i32
  }
}

</mosaic_0001>

<llo_original>
// kernel: tpu_custom_call.1
$region0: #{tpu_custom_call.1}
  #allocation0 [shape = 'u32[]', space=smem, size = 0x4, offset = 0x4, fixed_abs, tag = 'smem constant byte address 0x4 - core index']
  #allocation1 [shape = 'u32[144,128]{1,0:T(1,128)}', space=vmem, size = 0x12000, scoped, tag = 'internal scratch']
  %s0 = inlined_call_operand.vmem [shape: f32[2,4,16], index: 0, kind: input, shape index: {}]
  %s1 = inlined_call_operand.vmem [shape: f32[2,1,4,8], index: 1, kind: input, shape index: {}]
  %s2 = inlined_call_operand.vmem [shape: f32[8,12], index: 2, kind: input, shape index: {}]
  %s3 = inlined_call_operand.vmem [shape: f32[8,1], index: 3, kind: input, shape index: {}]
  %s4 = inlined_call_operand.vmem [shape: f32[8,24], index: 4, kind: input, shape index: {}]
  %s5 = inlined_call_operand.vmem [shape: f32[8,1], index: 5, kind: input, shape index: {}]
  %s6 = inlined_call_operand.vmem [shape: f32[8,4], index: 6, kind: input, shape index: {}]
  %s7 = inlined_call_operand.vmem [shape: f32[8,1], index: 7, kind: input, shape index: {}]
  %s8 = inlined_call_operand.hbm [shape: f32[2,8,16], index: 8, kind: output, shape index: {}]
  %s9 = sld [smem:[#allocation0]]
  $region65: #{tpu_custom_call.1} parent=0
    _
  %s11 = ssub.s32 1, %s9
  %s12 = scalar_select 0, %s11, %s9
  $region1: #{tpu_custom_call.1} parent=0
    #allocation2 [shape = 'u8[8192]{0}', space=vmem, size = 0x2000, scoped, tag = 'output window, operand 0']
    #allocation3 [shape = 's32[2]{0}', space=sflag, size = 0x8, scoped, tag = 'scoped memory for tpu_custom_call.1']
    %13 = vsyncpa [#allocation3], 0
    %s14 = scalar_lea.sflag [#allocation3], 1
    %15 = vsyncpa %s14, 0
    loop: start=0, step=1, limit=4
    $region2: #{tpu_custom_call.1} parent=1 // loop_pre_header
      _
    $region3: #{tpu_custom_call.1} parent=1 // loop_header
      %s17 = sphi 0, %s21
      %p18 = scmp.ge.s32.totalorder %s17, 4
      %s24 = sphi 0, %s36
      %s25 = sphi 0, %s32
      %s26 = sphi 0, %s24
      %s27 = sphi 0, %s25
      %s28 = sphi 0, %s26
      %s29 = sphi 0, %s27
      %s41 = sphi 0, %s43
      %s44 = sphi 0, %s41
      %s45 = sphi 0, %s44
      %s61 = sphi 0, %s45
      %s69 = sphi 0, %s71
      %s72 = sphi 0, %s69
      %s73 = sphi 0, %s72
      %s89 = sphi 0, %s73
      %s93 = sphi 0, %s93
      %s95 = sphi 0, %s93
      %s96 = sphi 0, %s95
      %s110 = sphi 0, %s96
      %s114 = sphi 0, %s114
      %s116 = sphi 0, %s114
      %s117 = sphi 0, %s116
      %s131 = sphi 0, %s117
      %s135 = sphi 0, %s135
      %s137 = sphi 0, %s135
      %s138 = sphi 0, %s137
      %s152 = sphi 0, %s138
      %s156 = sphi 0, %s156
      %s158 = sphi 0, %s156
      %s159 = sphi 0, %s158
      %s173 = sphi 0, %s159
      %s177 = sphi 0, %s177
      %s179 = sphi 0, %s177
      %s180 = sphi 0, %s179
      %s194 = sphi 0, %s180
      %s198 = sphi 0, %s198
      %s200 = sphi 0, %s198
      %s201 = sphi 0, %s200
      %s215 = sphi 0, %s201
      %s223 = sphi 0, %s225
      %s226 = sphi 0, %s223
      %s227 = sphi 0, %s226
      %s243 = sphi 0, %s227
    $region4: #{tpu_custom_call.1} parent=1 // loop_header_branch
      %20 = sbr.rel (%p18) target = $region8
    $region5: #{tpu_custom_call.1} parent=1 // loop_body
      %s22 = ssub.s32 %s17, 1
      %s23 = ssub.s32 %s17, 2
      %s30 = sadd.s32 1, %s25
      %p31 = scmp.ge.s32.totalorder %s30, 1
      %s32 = scalar_select %p31, 0, %s30
      %s33 = sadd.s32 1, %s24
      %s34 = scalar_select %p31, %s33, %s24
      %p35 = scmp.ge.s32.totalorder %s34, 2
      %s36 = scalar_select %p35, 0, %s34
      %s37 = ssub.s32 %s24, %s36
      %s38 = ssub.s32 %s25, %s32
      %s39 = sor.u32 %s37, %s38
      %p40 = scmp.eq.s32.totalorder %s39, 0
      %s42 = sadd.s32 %s41, 1
      %s43 = scalar_select %p40, %s41, %s42
      %p46 = pneg %p40
      %p47 = scmp.eq.s32.totalorder %s17, 1
      %p48 = por %p46, %p47
      %p49 = scmp.ne.s32.totalorder %s41, %s44
      %p50 = scmp.eq.s32.totalorder %s17, 0
      %p51 = por %p49, %p50
      %p52 = scmp.ne.s32.totalorder %s41, %s44
      %p53 = scmp.eq.s32.totalorder %s22, 1
      %p54 = por %p52, %p53
      %p55 = scmp.ne.s32.totalorder %s44, %s45
      %p56 = scmp.eq.s32.totalorder %s22, 0
      %p57 = por %p55, %p56
      %p58 = scmp.ne.s32.totalorder %s44, %s45
      %p59 = scmp.eq.s32.totalorder %s23, 1
      %p60 = por %p58, %p59
      %p62 = scmp.ne.s32.totalorder %s45, %s61
      %p63 = scmp.eq.s32.totalorder %s23, 0
      %p64 = por %p62, %p63
      %s65 = ssub.s32 %s24, %s36
      %s66 = ssub.s32 %s25, %s32
      %s67 = sor.u32 %s65, %s66
      %p68 = scmp.eq.s32.totalorder %s67, 0
      %s70 = sadd.s32 %s69, 1
      %s71 = scalar_select %p68, %s69, %s70
      %p74 = pneg %p68
      %p75 = scmp.eq.s32.totalorder %s17, 1
      %p76 = por %p74, %p75
      %p77 = scmp.ne.s32.totalorder %s69, %s72
      %p78 = scmp.eq.s32.totalorder %s17, 0
      %p79 = por %p77, %p78
      %p80 = scmp.ne.s32.totalorder %s69, %s72
      %p81 = scmp.eq.s32.totalorder %s22, 1
      %p82 = por %p80, %p81
      %p83 = scmp.ne.s32.totalorder %s72, %s73
      %p84 = scmp.eq.s32.totalorder %s22, 0
      %p85 = por %p83, %p84
      %p86 = scmp.ne.s32.totalorder %s72, %s73
      %p87 = scmp.eq.s32.totalorder %s23, 1
      %p88 = por %p86, %p87
      %p90 = scmp.ne.s32.totalorder %s73, %s89
      %p91 = scmp.eq.s32.totalorder %s23, 0
      %p92 = por %p90, %p91
      %s94 = sadd.s32 %s93, 1
      %p97 = scmp.eq.s32.totalorder %s17, 1
      %p98 = scmp.ne.s32.totalorder %s93, %s95
      %p99 = scmp.eq.s32.totalorder %s17, 0
      %p100 = por %p98, %p99
      %p101 = scmp.ne.s32.totalorder %s93, %s95
      %p102 = scmp.eq.s32.totalorder %s22, 1
      %p103 = por %p101, %p102
      %p104 = scmp.ne.s32.totalorder %s95, %s96
      %p105 = scmp.eq.s32.totalorder %s22, 0
      %p106 = por %p104, %p105
      %p107 = scmp.ne.s32.totalorder %s95, %s96
      %p108 = scmp.eq.s32.totalorder %s23, 1
      %p109 = por %p107, %p108
      %p111 = scmp.ne.s32.totalorder %s96, %s110
      %p112 = scmp.eq.s32.totalorder %s23, 0
      %p113 = por %p111, %p112
      %s115 = sadd.s32 %s114, 1
      %p118 = scmp.eq.s32.totalorder %s17, 1
      %p119 = scmp.ne.s32.totalorder %s114, %s116
      %p120 = scmp.eq.s32.totalorder %s17, 0
      %p121 = por %p119, %p120
      %p122 = scmp.ne.s32.totalorder %s114, %s116
      %p123 = scmp.eq.s32.totalorder %s22, 1
      %p124 = por %p122, %p123
      %p125 = scmp.ne.s32.totalorder %s116, %s117
      %p126 = scmp.eq.s32.totalorder %s22, 0
      %p127 = por %p125, %p126
      %p128 = scmp.ne.s32.totalorder %s116, %s117
      %p129 = scmp.eq.s32.totalorder %s23, 1
      %p130 = por %p128, %p129
      %p132 = scmp.ne.s32.totalorder %s117, %s131
      %p133 = scmp.eq.s32.totalorder %s23, 0
      %p134 = por %p132, %p133
      %s136 = sadd.s32 %s135, 1
      %p139 = scmp.eq.s32.totalorder %s17, 1
      %p140 = scmp.ne.s32.totalorder %s135, %s137
      %p141 = scmp.eq.s32.totalorder %s17, 0
      %p142 = por %p140, %p141
      %p143 = scmp.ne.s32.totalorder %s135, %s137
      %p144 = scmp.eq.s32.totalorder %s22, 1
      %p145 = por %p143, %p144
      %p146 = scmp.ne.s32.totalorder %s137, %s138
      %p147 = scmp.eq.s32.totalorder %s22, 0
      %p148 = por %p146, %p147
      %p149 = scmp.ne.s32.totalorder %s137, %s138
      %p150 = scmp.eq.s32.totalorder %s23, 1
      %p151 = por %p149, %p150
      %p153 = scmp.ne.s32.totalorder %s138, %s152
      %p154 = scmp.eq.s32.totalorder %s23, 0
      %p155 = por %p153, %p154
      %s157 = sadd.s32 %s156, 1
      %p160 = scmp.eq.s32.totalorder %s17, 1
      %p161 = scmp.ne.s32.totalorder %s156, %s158
      %p162 = scmp.eq.s32.totalorder %s17, 0
      %p163 = por %p161, %p162
      %p164 = scmp.ne.s32.totalorder %s156, %s158
      %p165 = scmp.eq.s32.totalorder %s22, 1
      %p166 = por %p164, %p165
      %p167 = scmp.ne.s32.totalorder %s158, %s159
      %p168 = scmp.eq.s32.totalorder %s22, 0
      %p169 = por %p167, %p168
      %p170 = scmp.ne.s32.totalorder %s158, %s159
      %p171 = scmp.eq.s32.totalorder %s23, 1
      %p172 = por %p170, %p171
      %p174 = scmp.ne.s32.totalorder %s159, %s173
      %p175 = scmp.eq.s32.totalorder %s23, 0
      %p176 = por %p174, %p175
      %s178 = sadd.s32 %s177, 1
      %p181 = scmp.eq.s32.totalorder %s17, 1
      %p182 = scmp.ne.s32.totalorder %s177, %s179
      %p183 = scmp.eq.s32.totalorder %s17, 0
      %p184 = por %p182, %p183
      %p185 = scmp.ne.s32.totalorder %s177, %s179
      %p186 = scmp.eq.s32.totalorder %s22, 1
      %p187 = por %p185, %p186
      %p188 = scmp.ne.s32.totalorder %s179, %s180
      %p189 = scmp.eq.s32.totalorder %s22, 0
      %p190 = por %p188, %p189
      %p191 = scmp.ne.s32.totalorder %s179, %s180
      %p192 = scmp.eq.s32.totalorder %s23, 1
      %p193 = por %p191, %p192
      %p195 = scmp.ne.s32.totalorder %s180, %s194
      %p196 = scmp.eq.s32.totalorder %s23, 0
      %p197 = por %p195, %p196
      %s199 = sadd.s32 %s198, 1
      %p202 = scmp.eq.s32.totalorder %s17, 1
      %p203 = scmp.ne.s32.totalorder %s198, %s200
      %p204 = scmp.eq.s32.totalorder %s17, 0
      %p205 = por %p203, %p204
      %p206 = scmp.ne.s32.totalorder %s198, %s200
      %p207 = scmp.eq.s32.totalorder %s22, 1
      %p208 = por %p206, %p207
      %p209 = scmp.ne.s32.totalorder %s200, %s201
      %p210 = scmp.eq.s32.totalorder %s22, 0
      %p211 = por %p209, %p210
      %p212 = scmp.ne.s32.totalorder %s200, %s201
      %p213 = scmp.eq.s32.totalorder %s23, 1
      %p214 = por %p212, %p213
      %p216 = scmp.ne.s32.totalorder %s201, %s215
      %p217 = scmp.eq.s32.totalorder %s23, 0
      %p218 = por %p216, %p217
      %s219 = ssub.s32 %s24, %s36
      %s220 = ssub.s32 %s25, %s32
      %s221 = sor.u32 %s219, %s220
      %p222 = scmp.eq.s32.totalorder %s221, 0
      %s224 = sadd.s32 %s223, 1
      %s225 = scalar_select %p222, %s223, %s224
      %p228 = pneg %p222
      %p229 = scmp.eq.s32.totalorder %s17, 1
      %p230 = por %p228, %p229
      %p231 = scmp.ne.s32.totalorder %s223, %s226
      %p232 = scmp.eq.s32.totalorder %s17, 0
      %p233 = por %p231, %p232
      %p234 = scmp.ne.s32.totalorder %s223, %s226
      %p235 = scmp.eq.s32.totalorder %s22, 1
      %p236 = por %p234, %p235
      %p237 = scmp.ne.s32.totalorder %s226, %s227
      %p238 = scmp.eq.s32.totalorder %s22, 0
      %p239 = por %p237, %p238
      %p240 = scmp.ne.s32.totalorder %s226, %s227
      %p241 = scmp.eq.s32.totalorder %s23, 1
      %p242 = por %p240, %p241
      %p244 = scmp.ne.s32.totalorder %s227, %s243
      %p245 = scmp.eq.s32.totalorder %s23, 0
      %p246 = por %p244, %p245
      %p247 = scmp.le.s32.totalorder 1, %s17
      %p248 = scmp.lt.s32.totalorder %s17, 3
      %p249 = pnand %p247, %p248
      %p250 = pneg %p249
      // Predicated region
      $region9: #{tpu_custom_call.1} parent=5 // pred_check
        _
      $region10: #{tpu_custom_call.1} parent=5 // pred_check_branch
        %252 = sbr.rel (%p249) target = $region12
      $region11: #{tpu_custom_call.1} parent=5 // pred_region
        %s253 = ssub.s32 %s17, 1
        // Predicated region
        $region13: #{tpu_custom_call.1} parent=11 // pred_check
          %p254 = pneg %p106
        $region14: #{tpu_custom_call.1} parent=11 // pred_check_branch
          %256 = sbr.rel (%p254) target = $region16
        $region15: #{tpu_custom_call.1} parent=11 // pred_region
          _
        $region16: #{tpu_custom_call.1} parent=11 // pred_fallthru
          _
        // Predicated region
        $region17: #{tpu_custom_call.1} parent=11 // pred_check
          %p257 = pneg %p127
        $region18: #{tpu_custom_call.1} parent=11 // pred_check_branch
          %259 = sbr.rel (%p257) target = $region20
        $region19: #{tpu_custom_call.1} parent=11 // pred_region
          _
        $region20: #{tpu_custom_call.1} parent=11 // pred_fallthru
          _
        // Predicated region
        $region21: #{tpu_custom_call.1} parent=11 // pred_check
          %p260 = pneg %p148
        $region22: #{tpu_custom_call.1} parent=11 // pred_check_branch
          %262 = sbr.rel (%p260) target = $region24
        $region23: #{tpu_custom_call.1} parent=11 // pred_region
          _
        $region24: #{tpu_custom_call.1} parent=11 // pred_fallthru
          _
        // Predicated region
        $region25: #{tpu_custom_call.1} parent=11 // pred_check
          %p263 = pneg %p169
        $region26: #{tpu_custom_call.1} parent=11 // pred_check_branch
          %265 = sbr.rel (%p263) target = $region28
        $region27: #{tpu_custom_call.1} parent=11 // pred_region
          _
        $region28: #{tpu_custom_call.1} parent=11 // pred_fallthru
          _
        // Predicated region
        $region29: #{tpu_custom_call.1} parent=11 // pred_check
          %p266 = pneg %p190
        $region30: #{tpu_custom_call.1} parent=11 // pred_check_branch
          %268 = sbr.rel (%p266) target = $region32
        $region31: #{tpu_custom_call.1} parent=11 // pred_region
          _
        $region32: #{tpu_custom_call.1} parent=11 // pred_fallthru
          _
        // Predicated region
        $region33: #{tpu_custom_call.1} parent=11 // pred_check
          %p269 = pneg %p211
        $region34: #{tpu_custom_call.1} parent=11 // pred_check_branch
          %271 = sbr.rel (%p269) target = $region36
        $region35: #{tpu_custom_call.1} parent=11 // pred_region
          _
        $region36: #{tpu_custom_call.1} parent=11 // pred_fallthru
          _
      $region12: #{tpu_custom_call.1} parent=5 // pred_fallthru
        _
      %p272 = scmp.lt.s32.totalorder %s17, 2
      // Predicated region
      $region37: #{tpu_custom_call.1} parent=5 // pred_check
        %p273 = pneg %p272
      $region38: #{tpu_custom_call.1} parent=5 // pred_check_branch
        %275 = sbr.rel (%p273) target = $region40
      $region39: #{tpu_custom_call.1} parent=5 // pred_region
        // Predicated region
        $region41: #{tpu_custom_call.1} parent=39 // pred_check
          %p276 = pneg %p51
        $region42: #{tpu_custom_call.1} parent=39 // pred_check_branch
          %278 = sbr.rel (%p276) target = $region44
        $region43: #{tpu_custom_call.1} parent=39 // pred_region
          %p279 = scmp.lt.s32.totalorder %s24, 1
          %s280 = scalar_select %p279, %s24, 1
          %p281 = scmp.lt.s32.totalorder %s25, 0
          %s282 = scalar_select %p281, %s25, 0
          %s283 = sadd.s32 %s282, %s280
          %s284 = smul.addr %s283, 4
          %s285 = scalar_lea.vmem %s0, %s284
        $region44: #{tpu_custom_call.1} parent=39 // pred_fallthru
          _
        // Predicated region
        $region45: #{tpu_custom_call.1} parent=39 // pred_check
          %p286 = pneg %p79
        $region46: #{tpu_custom_call.1} parent=39 // pred_check_branch
          %288 = sbr.rel (%p286) target = $region48
        $region47: #{tpu_custom_call.1} parent=39 // pred_region
          %p289 = scmp.lt.s32.totalorder %s24, 1
          %s290 = scalar_select %p289, %s24, 1
          %p291 = scmp.lt.s32.totalorder %s25, 0
          %s292 = scalar_select %p291, %s25, 0
          %s293 = sadd.s32 %s292, %s290
          %s294 = smul.addr %s293, 4
          %s295 = scalar_lea.vmem %s1, %s294
        $region48: #{tpu_custom_call.1} parent=39 // pred_fallthru
          _
      $region40: #{tpu_custom_call.1} parent=5 // pred_fallthru
        _
      %p296 = scmp.le.s32.totalorder 1, %s17
      %p297 = scmp.lt.s32.totalorder %s17, 3
      %p298 = pnand %p296, %p297
      %p299 = pneg %p298
      // Predicated region
      $region49: #{tpu_custom_call.1} parent=5 // pred_check
        _
      $region50: #{tpu_custom_call.1} parent=5 // pred_check_branch
        %301 = sbr.rel (%p298) target = $region52
      $region51: #{tpu_custom_call.1} parent=5 // pred_region
        %s302 = ssub.s32 %s17, 1
        %p303 = scmp.lt.s32.totalorder %s26, 1
        %s304 = scalar_select %p303, %s26, 1
        %p305 = scmp.lt.s32.totalorder %s27, 0
        %s306 = scalar_select %p305, %s27, 0
        %s307 = sadd.s32 %s306, %s304
        %s308 = smul.addr %s307, 4
        %s309 = scalar_lea.vmem %s0, %s308
        %p310 = pneg %p57
        %p311 = pneg %p54
        %p312 = scmp.lt.s32.totalorder %s26, 1
        %s313 = scalar_select %p312, %s26, 1
        %p314 = scmp.lt.s32.totalorder %s27, 0
        %s315 = scalar_select %p314, %s27, 0
        %s316 = sadd.s32 %s315, %s313
        %s317 = smul.addr %s316, 4
        %s318 = scalar_lea.vmem %s1, %s317
        %p319 = pneg %p85
        %p320 = pneg %p82
        %p321 = pneg %p106
        %p322 = pneg %p103
        %p323 = pneg %p127
        %p324 = pneg %p124
        %p325 = pneg %p148
        %p326 = pneg %p145
        %p327 = pneg %p169
        %p328 = pneg %p166
        %p329 = pneg %p190
        %p330 = pneg %p187
        %p331 = pneg %p211
        %p332 = pneg %p208
        %p333 = pneg %p239
        %p334 = pneg %p236
        %s335 = sand.u32 %s226, 1
        %s336 = scalar_lea.sflag [#allocation3], %s335
        %s337 = sand.u32 %s226, 1
        %s338 = smul.addr %s337, 8
        %s339 = scalar_lea.vmem [#allocation2], %s338
        %p340 = scmp.lt.s32.totalorder %s26, 1
        %s341 = scalar_select %p340, %s26, 1
        %p342 = scmp.lt.s32.totalorder %s27, 0
        %s343 = scalar_select %p342, %s27, 0
        %s344 = sadd.s32 %s343, %s341
        %s345 = smul.addr %s344, 4
        %s346 = scalar_lea.vmem %s0, %s345
        %p347 = scmp.lt.s32.totalorder %s26, 1
        %s348 = scalar_select %p347, %s26, 1
        %p349 = scmp.lt.s32.totalorder %s27, 0
        %s350 = scalar_select %p349, %s27, 0
        %s351 = sadd.s32 %s350, %s348
        %s352 = smul.addr %s351, 4
        %s353 = scalar_lea.vmem %s1, %s352
        %v354 = vld [vmem:[%s346] sm:$0xf]
        %v355 = vld [vmem:[%s353] sm:$0xf]
        %357 = vrot.lane.b32.xlu0 %v354, 8
        %v358 = vpop.permute.xlu0 %357
        %vm360 = vcmask 64512
        %v361 = vsel %vm360, %v355, %v358
        %v362 = vld [vmem:[%s2] sm:$0xff]
        %v364 = vrot.slane %v361, 4
        %v365 = vrot.slane %v358, 4
        %366 = vrot.lane.b32.xlu0 %v364, 126
        %v367 = vpop.permute.xlu0 %366
        %368 = vrot.lane.b32.xlu0 %v365, 126
        %v369 = vpop.permute.xlu0 %368
        %vm370 = vcmask 1031168
        %v371 = vsel %vm370, %v367, %v369
        %374 = vrot.lane.b32.xlu0 %v361, 124
        %v375 = vpop.permute.xlu0 %374
        %376 = vrot.lane.b32.xlu0 %v358, 124
        %v377 = vpop.permute.xlu0 %376
        %vm378 = vcmask 1014784
        %v379 = vsel %vm378, %v375, %v377
        %vm380 = vcmask 1043456
        %v381 = vsel %vm380, %v361, %v371
        %v382 = vsel %vm380, %v358, %v369
        %v383 = vld [vmem:[%s3] sm:$0xff]
        %385 = vset.pattern.permute.xlu0 0
        %386 = vperm.xlu0 %385, %v383
        %v387 = vpop.permute.xlu0 %386
        %vm389 = vcmask 97280
        %v391 = vsel %vm389, %v362, 0
        %v393 = vsel %vm380, %v379, 0
        %v395 = vsel %vm380, %v377, 0
        %397 = vmatprep.subr.mxu0 %v382
        %398 = vmatpush1.msra.mxu0 %v381
        %399 = vmatprep.subr.mxu0 %v395
        %400 = vmatpush1.msra.mxu0 %v393
        %401 = vmatprep.subr.mxu0 0.0
        %402 = vmatpush1.msra.mxu0 0.0
        %403 = vmatprep.subr.mxu0 0.0
        %404 = vmatpush1.msra.mxu0 0.0
        %405 = vmatprep.subr.mxu0 0.0
        %406 = vmatpush1.msra.mxu0 0.0
        %407 = vmatprep.subr.mxu0 0.0
        %408 = vmatpush1.msra.mxu0 0.0
        %409 = vmatprep.subr.mxu0 0.0
        %410 = vmatpush1.msra.mxu0 0.0
        %411 = vmatprep.subr.mxu0 0.0
        %412 = vmatpush1.msra.mxu0 0.0
        %413 = vmatprep.subr.mxu0 0.0
        %414 = vmatpush1.msra.mxu0 0.0
        %415 = vmatprep.subr.mxu0 0.0
        %416 = vmatpush1.msra.mxu0 0.0
        %417 = vmatprep.subr.mxu0 0.0
        %418 = vmatpush1.msra.mxu0 0.0
        %419 = vmatprep.subr.mxu0 0.0
        %420 = vmatpush1.msra.mxu0 0.0
        %421 = vmatprep.subr.mxu0 0.0
        %422 = vmatpush1.msra.mxu0 0.0
        %423 = vmatprep.subr.mxu0 0.0
        %424 = vmatpush1.msra.mxu0 0.0
        %425 = vmatprep.subr.mxu0 0.0
        %426 = vmatpush1.msra.mxu0 0.0
        %427 = vmatprep.subr.mxu0 0.0
        %428 = vmatpush1.msra.mxu0 0.0
        %429 = vmatprep.subr.mxu0 0.0
        %430 = vmatpush1.msra.mxu0 0.0
        %431 = vmatprep.subr.mxu0 0.0
        %432 = vmatpush1.msra.mxu0 0.0
        %433 = vmatprep.subr.mxu0 0.0
        %434 = vmatpush1.msra.mxu0 0.0
        %435 = vmatprep.subr.mxu0 0.0
        %436 = vmatpush1.msra.mxu0 0.0
        %437 = vmatprep.subr.mxu0 0.0
        %438 = vmatpush1.msra.mxu0 0.0
        %439 = vmatprep.subr.mxu0 0.0
        %440 = vmatpush1.msra.mxu0 0.0
        %441 = vmatprep.subr.mxu0 0.0
        %442 = vmatpush1.msra.mxu0 0.0
        %443 = vmatprep.subr.mxu0 0.0
        %444 = vmatpush1.msra.mxu0 0.0
        %445 = vmatprep.subr.mxu0 0.0
        %446 = vmatpush1.msra.mxu0 0.0
        %447 = vmatprep.subr.mxu0 0.0
        %448 = vmatpush1.msra.mxu0 0.0
        %449 = vmatprep.subr.mxu0 0.0
        %450 = vmatpush1.msra.mxu0 0.0
        %451 = vmatprep.subr.mxu0 0.0
        %452 = vmatpush1.msra.mxu0 0.0
        %453 = vmatprep.subr.mxu0 0.0
        %454 = vmatpush1.msra.mxu0 0.0
        %455 = vmatprep.subr.mxu0 0.0
        %456 = vmatpush1.msra.mxu0 0.0
        %457 = vmatprep.subr.mxu0 0.0
        %458 = vmatpush1.msra.mxu0 0.0
        %459 = vmatprep.subr.mxu0 0.0
        %460 = vmatpush1.msra.mxu0 0.0
        %461 = vmatprep.mubr.f32.mxu0 0.0
        %462 = vmatmul.mubr.f32.gmra.mrb[0].mxu0 %v391
        %v463 = vpop.f32.mrb[0].mxu0
        %v464 = vadd.f32 %v387, %v463
        %v465 = vpop.f32.mrb[0].mxu0
        %v466 = vadd.f32 %v387, %v465
        %467 = vdwg.mxu0
        %v468 = vmax.f32 %v464, 0.0
        %v469 = vmax.f32 %v466, 0.0
        %s470 = smul.u32 %s27, 128
        %v471 = vlaneseq
        %v472 = vand.u32 %v471, 127
        %v473 = vadd.s32 %v472, 128
        %v474 = vstv %s470
        %v475 = vadd.s32 %v472, %v474
        %v476 = vadd.s32 %v473, %v474
        %vm477 = vcmp.ge.s32.totalorder %v475, 4
        %vm478 = vcmp.ge.s32.totalorder %v476, 4
        %v479 = vsel %vm477, 1, 0
        %v480 = vsel %vm478, 1, 0
        %vm481 = vcmp.eq.s32.totalorder %v479, 1
        %vm482 = vcmp.eq.s32.totalorder %v480, 1
        %v483 = vsel %vm481, %v468, 0.0
        %v484 = vsel %vm482, %v469, 0.0
        %v485 = vld [vmem:[%s4] sm:$0xff]
        %488 = vrot.lane.b32.xlu0 %v483, 126
        %v489 = vpop.permute.xlu0 %488
        %490 = vrot.lane.b32.xlu0 %v484, 126
        %v491 = vpop.permute.xlu0 %490
        %v492 = vsel %vm370, %v489, %v491
        %494 = vrot.lane.b32.xlu0 %v483, 124
        %v495 = vpop.permute.xlu0 %494
        %496 = vrot.lane.b32.xlu0 %v484, 124
        %v497 = vpop.permute.xlu0 %496
        %v498 = vsel %vm378, %v495, %v497
        %v500 = vld [vmem:[%s5] sm:$0xff]
        %502 = vset.pattern.permute.xlu0 0
        %503 = vperm.xlu0 %502, %v500
        %v504 = vpop.permute.xlu0 %503
        %vm506 = vcmask 195584
        %v508 = vsel %vm506, %v485, 0
        %510 = vmatprep.subr.mxu0 0.0
        %511 = vmatpush1.msra.mxu0 %v483
        %512 = vmatprep.subr.mxu0 0.0
        %513 = vmatpush1.msra.mxu0 %v492
        %514 = vmatprep.subr.mxu0 0.0
        %515 = vmatpush1.msra.mxu0 %v498
        %516 = vmatprep.subr.mxu0 0.0
        %517 = vmatpush1.msra.mxu0 0.0
        %518 = vmatprep.subr.mxu0 0.0
        %519 = vmatpush1.msra.mxu0 0.0
        %520 = vmatprep.subr.mxu0 0.0
        %521 = vmatpush1.msra.mxu0 0.0
        %522 = vmatprep.subr.mxu0 0.0
        %523 = vmatpush1.msra.mxu0 0.0
        %524 = vmatprep.subr.mxu0 0.0
        %525 = vmatpush1.msra.mxu0 0.0
        %526 = vmatprep.subr.mxu0 0.0
        %527 = vmatpush1.msra.mxu0 0.0
        %528 = vmatprep.subr.mxu0 0.0
        %529 = vmatpush1.msra.mxu0 0.0
        %530 = vmatprep.subr.mxu0 0.0
        %531 = vmatpush1.msra.mxu0 0.0
        %532 = vmatprep.subr.mxu0 0.0
        %533 = vmatpush1.msra.mxu0 0.0
        %534 = vmatprep.subr.mxu0 0.0
        %535 = vmatpush1.msra.mxu0 0.0
        %536 = vmatprep.subr.mxu0 0.0
        %537 = vmatpush1.msra.mxu0 0.0
        %538 = vmatprep.subr.mxu0 0.0
        %539 = vmatpush1.msra.mxu0 0.0
        %540 = vmatprep.subr.mxu0 0.0
        %541 = vmatpush1.msra.mxu0 0.0
        %542 = vmatprep.subr.mxu0 0.0
        %543 = vmatpush1.msra.mxu0 0.0
        %544 = vmatprep.subr.mxu0 0.0
        %545 = vmatpush1.msra.mxu0 0.0
        %546 = vmatprep.subr.mxu0 0.0
        %547 = vmatpush1.msra.mxu0 0.0
        %548 = vmatprep.subr.mxu0 0.0
        %549 = vmatpush1.msra.mxu0 0.0
        %550 = vmatprep.subr.mxu0 0.0
        %551 = vmatpush1.msra.mxu0 0.0
        %552 = vmatprep.subr.mxu0 0.0
        %553 = vmatpush1.msra.mxu0 0.0
        %554 = vmatprep.subr.mxu0 0.0
        %555 = vmatpush1.msra.mxu0 0.0
        %556 = vmatprep.subr.mxu0 0.0
        %557 = vmatpush1.msra.mxu0 0.0
        %558 = vmatprep.subr.mxu0 0.0
        %559 = vmatpush1.msra.mxu0 0.0
        %560 = vmatprep.subr.mxu0 0.0
        %561 = vmatpush1.msra.mxu0 0.0
        %562 = vmatprep.subr.mxu0 0.0
        %563 = vmatpush1.msra.mxu0 0.0
        %564 = vmatprep.subr.mxu0 0.0
        %565 = vmatpush1.msra.mxu0 0.0
        %566 = vmatprep.subr.mxu0 0.0
        %567 = vmatpush1.msra.mxu0 0.0
        %568 = vmatprep.subr.mxu0 0.0
        %569 = vmatpush1.msra.mxu0 0.0
        %570 = vmatprep.subr.mxu0 0.0
        %571 = vmatpush1.msra.mxu0 0.0
        %572 = vmatprep.subr.mxu0 0.0
        %573 = vmatpush1.msra.mxu0 0.0
        %574 = vmatprep.mubr.f32.mxu0 0.0
        %575 = vmatmul.mubr.f32.gmra.mrb[0].mxu0 %v508
        %v576 = vpop.f32.mrb[0].mxu0
        %v577 = vadd.f32 %v504, %v576
        %v578 = vpop.f32.mrb[0].mxu0
        %579 = vdwg.mxu0
        %v580 = vmax.f32 %v577, 0.0
        %v581 = vld [vmem:[%s6] sm:$0xff]
        %v582 = vld [vmem:[%s7] sm:$0xff]
        %584 = vset.pattern.permute.xlu0 0
        %585 = vperm.xlu0 %584, %v582
        %v586 = vpop.permute.xlu0 %585
        %vm588 = vcmask 31744
        %v590 = vsel %vm588, %v581, 0
        %v592 = vsel %vm380, %v354, 0
        %594 = vmatprep.subr.mxu0 0.0
        %595 = vmatpush1.msra.mxu0 %v592
        %596 = vmatprep.subr.mxu0 0.0
        %597 = vmatpush1.msra.mxu0 0.0
        %598 = vmatprep.subr.mxu0 0.0
        %599 = vmatpush1.msra.mxu0 0.0
        %600 = vmatprep.subr.mxu0 0.0
        %601 = vmatpush1.msra.mxu0 0.0
        %602 = vmatprep.subr.mxu0 0.0
        %603 = vmatpush1.msra.mxu0 0.0
        %604 = vmatprep.subr.mxu0 0.0
        %605 = vmatpush1.msra.mxu0 0.0
        %606 = vmatprep.subr.mxu0 0.0
        %607 = vmatpush1.msra.mxu0 0.0
        %608 = vmatprep.subr.mxu0 0.0
        %609 = vmatpush1.msra.mxu0 0.0
        %610 = vmatprep.subr.mxu0 0.0
        %611 = vmatpush1.msra.mxu0 0.0
        %612 = vmatprep.subr.mxu0 0.0
        %613 = vmatpush1.msra.mxu0 0.0
        %614 = vmatprep.subr.mxu0 0.0
        %615 = vmatpush1.msra.mxu0 0.0
        %616 = vmatprep.subr.mxu0 0.0
        %617 = vmatpush1.msra.mxu0 0.0
        %618 = vmatprep.subr.mxu0 0.0
        %619 = vmatpush1.msra.mxu0 0.0
        %620 = vmatprep.subr.mxu0 0.0
        %621 = vmatpush1.msra.mxu0 0.0
        %622 = vmatprep.subr.mxu0 0.0
        %623 = vmatpush1.msra.mxu0 0.0
        %624 = vmatprep.subr.mxu0 0.0
        %625 = vmatpush1.msra.mxu0 0.0
        %626 = vmatprep.subr.mxu0 0.0
        %627 = vmatpush1.msra.mxu0 0.0
        %628 = vmatprep.subr.mxu0 0.0
        %629 = vmatpush1.msra.mxu0 0.0
        %630 = vmatprep.subr.mxu0 0.0
        %631 = vmatpush1.msra.mxu0 0.0
        %632 = vmatprep.subr.mxu0 0.0
        %633 = vmatpush1.msra.mxu0 0.0
        %634 = vmatprep.subr.mxu0 0.0
        %635 = vmatpush1.msra.mxu0 0.0
        %636 = vmatprep.subr.mxu0 0.0
        %637 = vmatpush1.msra.mxu0 0.0
        %638 = vmatprep.subr.mxu0 0.0
        %639 = vmatpush1.msra.mxu0 0.0
        %640 = vmatprep.subr.mxu0 0.0
        %641 = vmatpush1.msra.mxu0 0.0
        %642 = vmatprep.subr.mxu0 0.0
        %643 = vmatpush1.msra.mxu0 0.0
        %644 = vmatprep.subr.mxu0 0.0
        %645 = vmatpush1.msra.mxu0 0.0
        %646 = vmatprep.subr.mxu0 0.0
        %647 = vmatpush1.msra.mxu0 0.0
        %648 = vmatprep.subr.mxu0 0.0
        %649 = vmatpush1.msra.mxu0 0.0
        %650 = vmatprep.subr.mxu0 0.0
        %651 = vmatpush1.msra.mxu0 0.0
        %652 = vmatprep.subr.mxu0 0.0
        %653 = vmatpush1.msra.mxu0 0.0
        %654 = vmatprep.subr.mxu0 0.0
        %655 = vmatpush1.msra.mxu0 0.0
        %656 = vmatprep.subr.mxu0 0.0
        %657 = vmatpush1.msra.mxu0 0.0
        %658 = vmatprep.mubr.f32.mxu0 0.0
        %659 = vmatmul.mubr.f32.gmra.mrb[0].mxu0 %v590
        %v660 = vpop.f32.mrb[0].mxu0
        %v661 = vadd.f32 %v586, %v660
        %v662 = vpop.f32.mrb[0].mxu0
        %663 = vdwg.mxu0
        %v664 = vadd.f32 %v580, %v661
        %v665 = vmax.f32 %v664, 0.0
        %666 = vst [vmem:[%s339] sm:$0xff] %v665
        %s667 = sand.u32 %s226, 1
        %s668 = scalar_lea.sflag [#allocation3], %s667
        %s669 = sand.u32 %s226, 1
        %s670 = smul.addr %s669, 8
        %s671 = scalar_lea.vmem [#allocation2], %s670
        // Predicated region
        $region53: #{tpu_custom_call.1} parent=51 // pred_check
          %p672 = pneg %p236
        $region54: #{tpu_custom_call.1} parent=51 // pred_check_branch
          %674 = sbr.rel (%p672) target = $region56
        $region55: #{tpu_custom_call.1} parent=51 // pred_region
          %s676 = ssub.s32 128, 128
          %677 = vsyncadd %s668, %s676
          %s678 = sadd.s32 %s27, %s26
          %s679 = smul.addr %s678, 128
          %s680 = scalar_lea.hbm %s8, %s679
          %s682 = sshll.u32 %s671, 4
          %s683 = int_to_ptr.vmem [resolvable:$true] %s682
          %685 = dma.vmem_to_hbm [thread:$0]  %s683, 128, %s680, %s668
        $region56: #{tpu_custom_call.1} parent=51 // pred_fallthru
          _
      $region52: #{tpu_custom_call.1} parent=5 // pred_fallthru
        _
      %p686 = scmp.le.s32.totalorder 2, %s17
      // Predicated region
      $region57: #{tpu_custom_call.1} parent=5 // pred_check
        %p687 = pneg %p686
      $region58: #{tpu_custom_call.1} parent=5 // pred_check_branch
        %689 = sbr.rel (%p687) target = $region60
      $region59: #{tpu_custom_call.1} parent=5 // pred_region
        %s690 = ssub.s32 %s17, 2
        // Predicated region
        $region61: #{tpu_custom_call.1} parent=59 // pred_check
          %p691 = pneg %p242
        $region62: #{tpu_custom_call.1} parent=59 // pred_check_branch
          %693 = sbr.rel (%p691) target = $region64
        $region63: #{tpu_custom_call.1} parent=59 // pred_region
          %s694 = sand.u32 %s227, 1
          %s695 = scalar_lea.sflag [#allocation3], %s694
          %s696 = sand.u32 %s227, 1
          %s697 = smul.addr %s696, 8
          %s698 = scalar_lea.vmem [#allocation2], %s697
          %699 = dma.done %s695, 128
        $region64: #{tpu_custom_call.1} parent=59 // pred_fallthru
          _
      $region60: #{tpu_custom_call.1} parent=5 // pred_fallthru
        _
    $region6: #{tpu_custom_call.1} parent=1 // loop_footer
      %s21 = sadd.s32 1, %s17
    $region7: #{tpu_custom_call.1} parent=1 // loop_footer_branch
      %16 = sbr.rel target = $region3
    $region8: #{tpu_custom_call.1} parent=1 // loop_exit
      _
    %700 = vsyncpa [#allocation3], 1
    %s701 = scalar_lea.sflag [#allocation3], 1
    %702 = vsyncpa %s701, 1

</llo_original>
